<compile_context>
chip_gen: v6e
topology: v6e:2x2x1
jax: 0.10.0
libtpu: 0.0.40
codegen_flags: <defaults>
</compile_context>

<pallas_src>
import functools

import jax
import jax.numpy as jnp
from jax.experimental import pallas as pl
from jax.experimental.pallas import tpu as pltpu


def _round_up(n, m):
    return ((n + m - 1) // m) * m


@functools.lru_cache(maxsize=None)
def _vmem_capacity_bytes():
    try:
        return int(pltpu.get_tpu_info().vmem_capacity_bytes)
    except Exception:
        return 64 * 1024 * 1024  # conservative fallback (v7x per-core VMEM)


def fuse_gated_tanh_params(w1, b1, w2, b2, *, compute_dtype=jnp.bfloat16):
    """Fuse + lane-align the two linears.  Call ONCE at parameter-init time.

    w1/w2: (concat_dim, out_dim) (already-transposed nn.Linear weights),
    b1/b2: (out_dim,).  Returns (w12, b12): w12 is (D, 2*Op) in compute_dtype,
    b12 is (1, 2*Op) f32, with Op = round_up(out_dim, 128) and the sigmoid
    half pre-scaled by 0.5 (exact power-of-two scale for the tanh identity).
    """
    D, O = w1.shape
    Op = _round_up(O, 128)
    w12 = jnp.zeros((D, 2 * Op), jnp.float32)
    w12 = w12.at[:, :O].set(w1.astype(jnp.float32))
    w12 = w12.at[:, Op:Op + O].set(0.5 * w2.astype(jnp.float32))
    b12 = jnp.zeros((1, 2 * Op), jnp.float32)
    b12 = b12.at[:, :O].set(b1.astype(jnp.float32))
    b12 = b12.at[:, Op:Op + O].set(0.5 * b2.astype(jnp.float32))
    return w12.astype(compute_dtype), b12


def gated_tanh_kernel(x_ref, w_ref, b_ref, o_ref):
    Op = o_ref.shape[-1]  # 128-multiple -> lane-aligned split + dense stores
    # Single fused MXU pass with f32 accumulation: (tb, D) @ (D, 2*Op).
    z = jnp.dot(x_ref[...], w_ref[...], preferred_element_type=jnp.float32)
    z = z + b_ref[...]
    # One wide tanh over the whole tile; the 0.5 scale of the sigmoid identity
    # sigmoid(v) = 0.5*tanh(0.5*v) + 0.5 is already folded into w12/b12.
    t = jnp.tanh(z)
    o_ref[...] = (t[:, :Op] * (0.5 * t[:, Op:] + 0.5)).astype(o_ref.dtype)


def _select_block_b(B, D, Op, x_itemsize, w_itemsize, out_itemsize, block_b):
    """Static (trace-time) tile + VMEM-limit selection from the real footprint."""
    capacity = _vmem_capacity_bytes()
    budget = capacity // 2  # headroom: ~32 MiB on v7x, ~64 MiB on v5e/v6e

    weight_bytes = D * 2 * Op * w_itemsize            # single-buffered
    bias_bytes = 2 * Op * 4
    # Per batch row: double-buffered x + double-buffered out + f32 z/t temps.
    per_row = 2 * D * x_itemsize + 2 * Op * out_itemsize + 2 * (2 * Op) * 4
    avail = budget - weight_bytes - bias_bytes - (2 << 20)
    rows_fit = max(8, (avail // per_row) // 8 * 8) if avail > 8 * per_row else 8

    if block_b is None:
        # >= ~2 MiB per x DMA chunk amortizes the ~0.35us per-grid-step cost.
        block_b = max(1024, _round_up(pl.cdiv(2 << 20, max(D * x_itemsize, 1)), 8))
        # Keep >= 2 grid steps when the batch allows it (v7x has 2 TensorCores).
        if B > 8:
            block_b = min(block_b, _round_up(pl.cdiv(B, 2), 8))
    block_b = min(block_b, rows_fit, _round_up(B, 8))
    block_b = max(8, _round_up(block_b, 8))

    vmem_limit = weight_bytes + bias_bytes + block_b * per_row + (2 << 20)
    vmem_limit = int(min(max(vmem_limit, 4 << 20), capacity))
    return block_b, vmem_limit


@functools.partial(jax.jit, static_argnames=("out_dim", "block_b"))
def gated_tanh_fused(x, w12, b12, *, out_dim, block_b=None):
    """x: (B, concat_dim); (w12, b12) from fuse_gated_tanh_params."""
    B, D = x.shape
    two_op = w12.shape[1]
    Op = two_op // 2
    assert 2 * Op == two_op and out_dim <= Op
    out_dtype = x.dtype

    xc = x.astype(w12.dtype)  # bf16 (or f32) MXU operands; accumulation stays f32

    block_b, vmem_limit = _select_block_b(
        B, D, Op,
        jnp.dtype(w12.dtype).itemsize, jnp.dtype(w12.dtype).itemsize,
        jnp.dtype(out_dtype).itemsize, block_b)

    Bp = _round_up(B, block_b)
    if Bp != B:
        xc = jnp.pad(xc, ((0, Bp - B), (0, 0)))

    out = pl.pallas_call(
        gated_tanh_kernel,
        out_shape=jax.ShapeDtypeStruct((Bp, Op), out_dtype),
        grid_spec=pltpu.PrefetchScalarGridSpec(
            num_scalar_prefetch=0,
            grid=(Bp // block_b,),
            in_specs=[
                pl.BlockSpec((block_b, D), lambda i: (i, 0)),        # x (pipelined)
                pl.BlockSpec((D, two_op), lambda i: (0, 0),
                             pipeline_mode=pl.Buffered(1)),          # fused W (resident)
                pl.BlockSpec((1, two_op), lambda i: (0, 0),
                             pipeline_mode=pl.Buffered(1)),          # fused b (resident)
            ],
            out_specs=pl.BlockSpec((block_b, Op), lambda i: (i, 0)),  # lane-dense
        ),
        compiler_params=pltpu.CompilerParams(
            dimension_semantics=("parallel",),  # batch tiles shard across TCs (v7x)
            vmem_limit_bytes=vmem_limit,
        ),
    )(xc, w12, b12)

    return out[:B, :out_dim]


def gated_tanh(x, w1, b1, w2, b2, *, compute_dtype=jnp.bfloat16, block_b=None):
    """One-off convenience wrapper.  For repeated inference, call
    fuse_gated_tanh_params once and reuse (w12, b12) with gated_tanh_fused."""
    w12, b12 = fuse_gated_tanh_params(w1, b1, w2, b2, compute_dtype=compute_dtype)
    return gated_tanh_fused(x, w12, b12, out_dim=w1.shape[1], block_b=block_b)


def gated_tanh_ref(x, w1, b1, w2, b2):
    y_hat = jnp.tanh(x @ w1 + b1)
    g = jax.nn.sigmoid(x @ w2 + b2)
    return y_hat * g


if __name__ == "__main__":
    # Small shapes implied by the module: x is (batch, concat_dim).
    # batch chosen non-multiple-of-8 to exercise padding; out_dim < 128 to
    # exercise the lane-alignment padding path.
    batch, concat_dim, out_dim = 52, 48, 32

    key = jax.random.PRNGKey(0)
    kx, k1, k2, k3, k4 = jax.random.split(key, 5)

    x = jax.random.normal(kx, (batch, concat_dim), dtype=jnp.float32)

    # Deterministic param init (matching nn.Linear's uniform(+-1/sqrt(fan_in))).
    bound = 1.0 / jnp.sqrt(jnp.float32(concat_dim))
    # Stored already transposed: (concat_dim, out_dim) == W^T of nn.Linear.
    w1 = jax.random.uniform(k1, (concat_dim, out_dim), jnp.float32, -bound, bound)
    b1 = jax.random.uniform(k2, (out_dim,), jnp.float32, -bound, bound)
    w2 = jax.random.uniform(k3, (concat_dim, out_dim), jnp.float32, -bound, bound)
    b2 = jax.random.uniform(k4, (out_dim,), jnp.float32, -bound, bound)

    expected = gated_tanh_ref(x, w1, b1, w2, b2)

    # Parameters are fused ONCE (outside the per-call jit) and reused.
    w12_f32, b12_f32 = fuse_gated_tanh_params(w1, b1, w2, b2, compute_dtype=jnp.float32)
    w12_bf16, b12_bf16 = fuse_gated_tanh_params(w1, b1, w2, b2, compute_dtype=jnp.bfloat16)

    # 1) f32 MXU path: exactness check (tight tolerance).
    out_f32 = jax.block_until_ready(
        gated_tanh_fused(x, w12_f32, b12_f32, out_dim=out_dim))
    # 2) bf16 MXU path (default for v6e/v7x): f32 accumulation, looser tolerance.
    out_bf16 = jax.block_until_ready(
        gated_tanh_fused(x, w12_bf16, b12_bf16, out_dim=out_dim))
    # 3) bf16 path with an explicit small tile -> 4 grid steps + padded tail.
    out_tiled = jax.block_until_ready(
        gated_tanh_fused(x, w12_bf16, b12_bf16, out_dim=out_dim, block_b=16))

    assert out_f32.shape == (batch, out_dim)
    assert out_bf16.shape == (batch, out_dim)
    assert out_tiled.shape == (batch, out_dim)
    assert jnp.allclose(out_f32, expected, atol=1e-5, rtol=1e-5), "mismatch (f32 path)"
    assert jnp.allclose(out_bf16, expected, atol=2e-2, rtol=2e-2), "mismatch (bf16 path)"
    assert jnp.allclose(out_tiled, expected, atol=2e-2, rtol=2e-2), "mismatch (bf16, block_b=16)"

    print("KERNEL_OK")
</pallas_src>

<mosaic_0001>
module attributes {stable_mosaic.version = 11 : i64} {
  func.func @gated_tanh_kernel(%arg0: i32, %arg1: memref<32x48xf32, #tpu.memory_space<vmem>>, %arg2: memref<48x256xf32, #tpu.memory_space<vmem>>, %arg3: memref<1x256xf32, #tpu.memory_space<vmem>>, %arg4: memref<32x128xf32, #tpu.memory_space<vmem>>) attributes {dimension_semantics = [#tpu.dimension_semantics<parallel>], iteration_bounds = array<i64: 2>, scalar_prefetch = 0 : i64, scratch_operands = 0 : i64, tpu.core_type = #tpu.core_type<tc>, window_params = [{transform_indices = @transform_0, window_bounds = array<i64: 32, 48>}, {pipeline_mode = #tpu.pipeline_mode<synchronous>, transform_indices = @transform_1, window_bounds = array<i64: 48, 256>}, {pipeline_mode = #tpu.pipeline_mode<synchronous>, transform_indices = @transform_2, window_bounds = array<i64: 1, 256>}, {transform_indices = @transform_3, window_bounds = array<i64: 32, 128>}]} {
    %c0 = arith.constant 0 : index
    %c0_0 = arith.constant 0 : index
    %0 = vector.load %arg1[%c0, %c0_0] : memref<32x48xf32, #tpu.memory_space<vmem>>, vector<32x48xf32>
    %c0_1 = arith.constant 0 : index
    %c0_2 = arith.constant 0 : index
    %1 = vector.load %arg2[%c0_1, %c0_2] : memref<48x256xf32, #tpu.memory_space<vmem>>, vector<48x256xf32>
    %cst = arith.constant dense<0.000000e+00> : vector<32x256xf32>
    %2 = tpu.matmul %0, %1, %cst {dimension_numbers = #tpu.dot_dimension_numbers<[1], [0], [0], [1], [0, 0, 1, 1], [], []>} : vector<32x48xf32>, vector<48x256xf32>, vector<32x256xf32> -> vector<32x256xf32>
    %c0_3 = arith.constant 0 : index
    %c0_4 = arith.constant 0 : index
    %3 = vector.load %arg3[%c0_3, %c0_4] : memref<1x256xf32, #tpu.memory_space<vmem>>, vector<1x256xf32>
    %4 = vector.broadcast %3 : vector<1x256xf32> to vector<32x256xf32>
    %5 = arith.addf %2, %4 : vector<32x256xf32>
    %6 = math.tanh %5 : vector<32x256xf32>
    %7 = vector.extract_strided_slice %6 {offsets = [0, 0], sizes = [32, 128], strides = [1, 1]} : vector<32x256xf32> to vector<32x128xf32>
    %8 = vector.extract_strided_slice %6 {offsets = [0, 128], sizes = [32, 128], strides = [1, 1]} : vector<32x256xf32> to vector<32x128xf32>
    %cst_5 = arith.constant 5.000000e-01 : f32
    %9 = vector.broadcast %cst_5 : f32 to vector<32x128xf32>
    %10 = arith.mulf %9, %8 : vector<32x128xf32>
    %cst_6 = arith.constant 5.000000e-01 : f32
    %11 = vector.broadcast %cst_6 : f32 to vector<32x128xf32>
    %12 = arith.addf %10, %11 : vector<32x128xf32>
    %13 = arith.mulf %7, %12 : vector<32x128xf32>
    %c0_7 = arith.constant 0 : index
    %c0_8 = arith.constant 0 : index
    %14 = vector.load %arg4[%c0_7, %c0_8] : memref<32x128xf32, #tpu.memory_space<vmem>>, vector<32x128xf32>
    tpu.vector_store %arg4[%c0_7, %c0_8], %13 {strides = array<i32>} : memref<32x128xf32, #tpu.memory_space<vmem>>, vector<32x128xf32>,
    return
  }
  func.func @transform_0(%arg0: i32) -> (i32, i32) {
    %c0_i32 = arith.constant 0 : i32
    %c0_i32_0 = arith.constant 0 : i32
    return %arg0, %c0_i32 : i32, i32
  }
  func.func @transform_1(%arg0: i32) -> (i32, i32) {
    %c0_i32 = arith.constant 0 : i32
    %c0_i32_0 = arith.constant 0 : i32
    %c0_i32_1 = arith.constant 0 : i32
    return %c0_i32, %c0_i32_0 : i32, i32
  }
  func.func @transform_2(%arg0: i32) -> (i32, i32) {
    %c0_i32 = arith.constant 0 : i32
    %c0_i32_0 = arith.constant 0 : i32
    %c0_i32_1 = arith.constant 0 : i32
    return %c0_i32, %c0_i32_0 : i32, i32
  }
  func.func @transform_3(%arg0: i32) -> (i32, i32) {
    %c0_i32 = arith.constant 0 : i32
    %c0_i32_0 = arith.constant 0 : i32
    return %arg0, %c0_i32 : i32, i32
  }
}

</mosaic_0001>

<llo_original>
// kernel: gated_tanh_fused.1
$region0: #{gated_tanh_fused.1}
  #allocation0 [shape = 'u32[]', space=smem, size = 0x4, offset = 0x4, fixed_abs, tag = 'smem constant byte address 0x4 - core index']
  #allocation1 [shape = 'u32[144,128]{1,0:T(1,128)}', space=vmem, size = 0x12000, scoped, tag = 'internal scratch']
  %s0 = inlined_call_operand.vmem [shape: f32[64,48], index: 0, kind: input, shape index: {}]
  %s1 = inlined_call_operand.vmem [shape: f32[48,256], index: 1, kind: input, shape index: {}]
  %s2 = inlined_call_operand.vmem [shape: f32[1,256], index: 2, kind: input, shape index: {}]
  %s3 = inlined_call_operand.vmem [shape: f32[64,128], index: 3, kind: output, shape index: {}]
  %s4 = sld [smem:[#allocation0]]
  $region45: #{gated_tanh_fused.1} parent=0
    _
  %s6 = ssub.s32 1, %s4
  %s7 = scalar_select 0, %s6, %s4
  loop: start=0, step=1, limit=4
  $region2: #{gated_tanh_fused.1} parent=0 // loop_pre_header
    _
  $region3: #{gated_tanh_fused.1} parent=0 // loop_header
    %s9 = sphi 0, %s13
    %p10 = scmp.ge.s32.totalorder %s9, 4
    %s19 = sphi 0, %s21
    %s22 = sphi 0, %s19
    %s23 = sphi 0, %s22
    %s39 = sphi 0, %s23
    %s43 = sphi 0, %s43
    %s45 = sphi 0, %s43
    %s46 = sphi 0, %s45
    %s60 = sphi 0, %s46
    %s64 = sphi 0, %s64
    %s66 = sphi 0, %s64
    %s67 = sphi 0, %s66
    %s81 = sphi 0, %s67
    %s87 = sphi 0, %s89
    %s90 = sphi 0, %s87
    %s91 = sphi 0, %s90
    %s107 = sphi 0, %s91
  $region4: #{gated_tanh_fused.1} parent=0 // loop_header_branch
    %12 = sbr.rel (%p10) target = $region8
  $region5: #{gated_tanh_fused.1} parent=0 // loop_body
    %s14 = ssub.s32 %s9, 1
    %s15 = ssub.s32 %s9, 2
    %s16 = sadd.s32 %s9, 1
    %s17 = ssub.s32 %s9, %s16
    %p18 = scmp.eq.s32.totalorder %s17, 0
    %s20 = sadd.s32 %s19, 1
    %s21 = scalar_select %p18, %s19, %s20
    %p24 = pneg %p18
    %p25 = scmp.eq.s32.totalorder %s9, 1
    %p26 = por %p24, %p25
    %p27 = scmp.ne.s32.totalorder %s19, %s22
    %p28 = scmp.eq.s32.totalorder %s9, 0
    %p29 = por %p27, %p28
    %p30 = scmp.ne.s32.totalorder %s19, %s22
    %p31 = scmp.eq.s32.totalorder %s14, 1
    %p32 = por %p30, %p31
    %p33 = scmp.ne.s32.totalorder %s22, %s23
    %p34 = scmp.eq.s32.totalorder %s14, 0
    %p35 = por %p33, %p34
    %p36 = scmp.ne.s32.totalorder %s22, %s23
    %p37 = scmp.eq.s32.totalorder %s15, 1
    %p38 = por %p36, %p37
    %p40 = scmp.ne.s32.totalorder %s23, %s39
    %p41 = scmp.eq.s32.totalorder %s15, 0
    %p42 = por %p40, %p41
    %s44 = sadd.s32 %s43, 1
    %p47 = scmp.eq.s32.totalorder %s9, 1
    %p48 = scmp.ne.s32.totalorder %s43, %s45
    %p49 = scmp.eq.s32.totalorder %s9, 0
    %p50 = por %p48, %p49
    %p51 = scmp.ne.s32.totalorder %s43, %s45
    %p52 = scmp.eq.s32.totalorder %s14, 1
    %p53 = por %p51, %p52
    %p54 = scmp.ne.s32.totalorder %s45, %s46
    %p55 = scmp.eq.s32.totalorder %s14, 0
    %p56 = por %p54, %p55
    %p57 = scmp.ne.s32.totalorder %s45, %s46
    %p58 = scmp.eq.s32.totalorder %s15, 1
    %p59 = por %p57, %p58
    %p61 = scmp.ne.s32.totalorder %s46, %s60
    %p62 = scmp.eq.s32.totalorder %s15, 0
    %p63 = por %p61, %p62
    %s65 = sadd.s32 %s64, 1
    %p68 = scmp.eq.s32.totalorder %s9, 1
    %p69 = scmp.ne.s32.totalorder %s64, %s66
    %p70 = scmp.eq.s32.totalorder %s9, 0
    %p71 = por %p69, %p70
    %p72 = scmp.ne.s32.totalorder %s64, %s66
    %p73 = scmp.eq.s32.totalorder %s14, 1
    %p74 = por %p72, %p73
    %p75 = scmp.ne.s32.totalorder %s66, %s67
    %p76 = scmp.eq.s32.totalorder %s14, 0
    %p77 = por %p75, %p76
    %p78 = scmp.ne.s32.totalorder %s66, %s67
    %p79 = scmp.eq.s32.totalorder %s15, 1
    %p80 = por %p78, %p79
    %p82 = scmp.ne.s32.totalorder %s67, %s81
    %p83 = scmp.eq.s32.totalorder %s15, 0
    %p84 = por %p82, %p83
    %s85 = ssub.s32 %s9, %s16
    %p86 = scmp.eq.s32.totalorder %s85, 0
    %s88 = sadd.s32 %s87, 1
    %s89 = scalar_select %p86, %s87, %s88
    %p92 = pneg %p86
    %p93 = scmp.eq.s32.totalorder %s9, 1
    %p94 = por %p92, %p93
    %p95 = scmp.ne.s32.totalorder %s87, %s90
    %p96 = scmp.eq.s32.totalorder %s9, 0
    %p97 = por %p95, %p96
    %p98 = scmp.ne.s32.totalorder %s87, %s90
    %p99 = scmp.eq.s32.totalorder %s14, 1
    %p100 = por %p98, %p99
    %p101 = scmp.ne.s32.totalorder %s90, %s91
    %p102 = scmp.eq.s32.totalorder %s14, 0
    %p103 = por %p101, %p102
    %p104 = scmp.ne.s32.totalorder %s90, %s91
    %p105 = scmp.eq.s32.totalorder %s15, 1
    %p106 = por %p104, %p105
    %p108 = scmp.ne.s32.totalorder %s91, %s107
    %p109 = scmp.eq.s32.totalorder %s15, 0
    %p110 = por %p108, %p109
    %p111 = scmp.le.s32.totalorder 1, %s9
    %p112 = scmp.lt.s32.totalorder %s9, 3
    %p113 = pnand %p111, %p112
    %p114 = pneg %p113
    // Predicated region
    $region9: #{gated_tanh_fused.1} parent=5 // pred_check
      _
    $region10: #{gated_tanh_fused.1} parent=5 // pred_check_branch
      %116 = sbr.rel (%p113) target = $region12
    $region11: #{gated_tanh_fused.1} parent=5 // pred_region
      %s117 = ssub.s32 %s9, 1
      // Predicated region
      $region13: #{gated_tanh_fused.1} parent=11 // pred_check
        %p118 = pneg %p56
      $region14: #{gated_tanh_fused.1} parent=11 // pred_check_branch
        %120 = sbr.rel (%p118) target = $region16
      $region15: #{gated_tanh_fused.1} parent=11 // pred_region
        _
      $region16: #{gated_tanh_fused.1} parent=11 // pred_fallthru
        _
      // Predicated region
      $region17: #{gated_tanh_fused.1} parent=11 // pred_check
        %p121 = pneg %p77
      $region18: #{gated_tanh_fused.1} parent=11 // pred_check_branch
        %123 = sbr.rel (%p121) target = $region20
      $region19: #{gated_tanh_fused.1} parent=11 // pred_region
        _
      $region20: #{gated_tanh_fused.1} parent=11 // pred_fallthru
        _
    $region12: #{gated_tanh_fused.1} parent=5 // pred_fallthru
      _
    %p124 = scmp.lt.s32.totalorder %s9, 2
    // Predicated region
    $region21: #{gated_tanh_fused.1} parent=5 // pred_check
      %p125 = pneg %p124
    $region22: #{gated_tanh_fused.1} parent=5 // pred_check_branch
      %127 = sbr.rel (%p125) target = $region24
    $region23: #{gated_tanh_fused.1} parent=5 // pred_region
      // Predicated region
      $region25: #{gated_tanh_fused.1} parent=23 // pred_check
        %p128 = pneg %p29
      $region26: #{gated_tanh_fused.1} parent=23 // pred_check_branch
        %130 = sbr.rel (%p128) target = $region28
      $region27: #{gated_tanh_fused.1} parent=23 // pred_region
        %s131 = smul.u32 4, %s9
        %p132 = scmp.lt.s32.totalorder %s131, 7
        %s133 = scalar_select %p132, %s131, 7
        %s134 = smul.addr %s133, 8
        %s135 = scalar_lea.vmem %s0, %s134
        %s136 = smul.u32 4, %s9
      $region28: #{gated_tanh_fused.1} parent=23 // pred_fallthru
        _
    $region24: #{gated_tanh_fused.1} parent=5 // pred_fallthru
      _
    %p137 = scmp.le.s32.totalorder 1, %s9
    %p138 = scmp.lt.s32.totalorder %s9, 3
    %p139 = pnand %p137, %p138
    %p140 = pneg %p139
    // Predicated region
    $region29: #{gated_tanh_fused.1} parent=5 // pred_check
      _
    $region30: #{gated_tanh_fused.1} parent=5 // pred_check_branch
      %142 = sbr.rel (%p139) target = $region32
    $region31: #{gated_tanh_fused.1} parent=5 // pred_region
      %s143 = ssub.s32 %s9, 1
      %s144 = smul.u32 4, %s14
      %p145 = scmp.lt.s32.totalorder %s144, 7
      %s146 = scalar_select %p145, %s144, 7
      %s147 = smul.addr %s146, 8
      %s148 = scalar_lea.vmem %s0, %s147
      %p149 = pneg %p35
      %p150 = pneg %p32
      %p151 = pneg %p56
      %p152 = pneg %p53
      %p153 = pneg %p77
      %p154 = pneg %p74
      %p155 = pneg %p103
      %p156 = pneg %p100
      %s157 = smul.u32 4, %s14
      %p158 = scmp.lt.s32.totalorder %s157, 7
      %s159 = scalar_select %p158, %s157, 7
      %s160 = smul.addr %s159, 8
      %s161 = scalar_lea.vmem %s3, %s160
      %s162 = smul.u32 4, %s14
      %p163 = scmp.lt.s32.totalorder %s162, 7
      %s164 = scalar_select %p163, %s162, 7
      %s165 = smul.addr %s164, 8
      %s166 = scalar_lea.vmem %s0, %s165
      %s167 = smul.u32 4, %s14
      %s168 = smul.u32 4, %s14
      %p169 = scmp.lt.s32.totalorder %s168, 7
      %s170 = scalar_select %p169, %s168, 7
      %s171 = smul.addr %s170, 8
      %s172 = scalar_lea.vmem %s3, %s171
      %s173 = smul.u32 4, %s14
      %v174 = vld [vmem:[%s166] sm:$0xff]
      %v175 = vld [vmem:[%s166 + $0x8] sm:$0xff]
      %v176 = vld [vmem:[%s166 + $0x10] sm:$0xff]
      %v177 = vld [vmem:[%s166 + $0x18] sm:$0xff]
      %v178 = vld [vmem:[%s1] sm:$0xff]
      %v179 = vld [vmem:[%s1 + $0x8] sm:$0xff]
      %v180 = vld [vmem:[%s1 + $0x10] sm:$0xff]
      %v181 = vld [vmem:[%s1 + $0x18] sm:$0xff]
      %v182 = vld [vmem:[%s1 + $0x20] sm:$0xff]
      %v183 = vld [vmem:[%s1 + $0x28] sm:$0xff]
      %v184 = vld [vmem:[%s1 + $0x30] sm:$0xff]
      %v185 = vld [vmem:[%s1 + $0x38] sm:$0xff]
      %v186 = vld [vmem:[%s1 + $0x40] sm:$0xff]
      %v187 = vld [vmem:[%s1 + $0x48] sm:$0xff]
      %v188 = vld [vmem:[%s1 + $0x50] sm:$0xff]
      %v189 = vld [vmem:[%s1 + $0x58] sm:$0xff]
      %v190 = vld [vmem:[%s2] sm:$0x3]
      %v192 = vlaneseq
      %v193 = vshrl.u32 %v192, 7
      %v194 = vsub.s32 0, %v193
      %v195 = vrot.slane %v190, %v194
      %v196 = vlaneseq
      %v197 = vshrl.u32 %v196, 7
      %v198 = vsub.s32 1, %v197
      %v199 = vrot.slane %v190, %v198
      %vm202 = vcmask 392192
      %v204 = vsel %vm202, %v174, 0
      %v207 = vsel %vm202, %v175, 0
      %v210 = vsel %vm202, %v176, 0
      %v213 = vsel %vm202, %v177, 0
      %215 = vmatprep.subr.mxu0 0.0
      %216 = vmatpush1.msra.mxu0 0.0
      %217 = vmatprep.subr.mxu0 0.0
      %218 = vmatpush1.msra.mxu0 0.0
      %219 = vmatprep.subr.mxu0 0.0
      %220 = vmatpush1.msra.mxu0 0.0
      %221 = vmatprep.subr.mxu0 0.0
      %222 = vmatpush1.msra.mxu0 0.0
      %223 = vmatprep.subr.mxu0 0.0
      %224 = vmatpush1.msra.mxu0 0.0
      %225 = vmatprep.subr.mxu0 0.0
      %226 = vmatpush1.msra.mxu0 0.0
      %227 = vmatprep.subr.mxu0 0.0
      %228 = vmatpush1.msra.mxu0 0.0
      %229 = vmatprep.subr.mxu0 0.0
      %230 = vmatpush1.msra.mxu0 0.0
      %231 = vmatprep.subr.mxu0 0.0
      %232 = vmatpush1.msra.mxu0 0.0
      %233 = vmatprep.subr.mxu0 0.0
      %234 = vmatpush1.msra.mxu0 0.0
      %235 = vmatprep.subr.mxu0 %v189
      %236 = vmatpush1.msra.mxu0 %v188
      %237 = vmatprep.subr.mxu0 %v187
      %238 = vmatpush1.msra.mxu0 %v186
      %239 = vmatprep.subr.mxu0 %v185
      %240 = vmatpush1.msra.mxu0 %v184
      %241 = vmatprep.subr.mxu0 %v183
      %242 = vmatpush1.msra.mxu0 %v182
      %243 = vmatprep.subr.mxu0 %v181
      %244 = vmatpush1.msra.mxu0 %v180
      %245 = vmatprep.subr.mxu0 %v179
      %246 = vmatpush1.msra.mxu0 %v178
      %247 = vmatprep.subr.mxu0 0.0
      %248 = vmatpush2.msra.mxu0 0.0
      %249 = vmatprep.subr.mxu0 0.0
      %250 = vmatpush2.msra.mxu0 0.0
      %251 = vmatprep.subr.mxu0 0.0
      %252 = vmatpush2.msra.mxu0 0.0
      %253 = vmatprep.subr.mxu0 0.0
      %254 = vmatpush2.msra.mxu0 0.0
      %255 = vmatprep.subr.mxu0 0.0
      %256 = vmatpush2.msra.mxu0 0.0
      %257 = vmatprep.subr.mxu0 0.0
      %258 = vmatpush2.msra.mxu0 0.0
      %259 = vmatprep.subr.mxu0 0.0
      %260 = vmatpush2.msra.mxu0 0.0
      %261 = vmatprep.subr.mxu0 0.0
      %262 = vmatpush2.msra.mxu0 0.0
      %263 = vmatprep.subr.mxu0 0.0
      %264 = vmatpush2.msra.mxu0 0.0
      %265 = vmatprep.subr.mxu0 0.0
      %266 = vmatpush2.msra.mxu0 0.0
      %267 = vmatprep.subr.mxu0 0.0
      %268 = vmatpush2.msra.mxu0 0.0
      %269 = vmatprep.subr.mxu0 0.0
      %270 = vmatpush2.msra.mxu0 0.0
      %271 = vmatprep.subr.mxu0 0.0
      %272 = vmatpush2.msra.mxu0 0.0
      %273 = vmatprep.subr.mxu0 0.0
      %274 = vmatpush2.msra.mxu0 0.0
      %275 = vmatprep.subr.mxu0 0.0
      %276 = vmatpush2.msra.mxu0 0.0
      %277 = vmatprep.subr.mxu0 0.0
      %278 = vmatpush2.msra.mxu0 0.0
      %279 = vmatprep.mubr.f32.mxu0 0.0
      %280 = vmatmul.mubr.f32.gmra.mxu0 %v204
      %v281 = vpop.f32.mrf.mxu0
      %v282 = vadd.f32 %v195, %v281
      %v283 = vpop.f32.mrf.mxu0
      %v284 = vadd.f32 %v199, %v283
      %285 = vmatprep.mubr.f32.mxu0 0.0
      %286 = vmatmul.mubr.f32.gmra.mxu0 %v207
      %v287 = vpop.f32.mrf.mxu0
      %v288 = vadd.f32 %v195, %v287
      %v289 = vpop.f32.mrf.mxu0
      %v290 = vadd.f32 %v199, %v289
      %291 = vmatprep.mubr.f32.mxu0 0.0
      %292 = vmatmul.mubr.f32.gmra.mxu0 %v210
      %v293 = vpop.f32.mrf.mxu0
      %v294 = vadd.f32 %v195, %v293
      %v295 = vpop.f32.mrf.mxu0
      %v296 = vadd.f32 %v199, %v295
      %297 = vmatprep.mubr.f32.mxu0 0.0
      %298 = vmatmul.mubr.f32.gmra.mxu0 %v213
      %v299 = vpop.f32.mrf.mxu0
      %v300 = vadd.f32 %v195, %v299
      %v301 = vpop.f32.mrf.mxu0
      %v302 = vadd.f32 %v199, %v301
      %303 = vdwg.mxu0
      %v304 = vtanh.pop %v282
      %v305 = vtanh.pop %v284
      %v306 = vtanh.pop %v288
      %v307 = vtanh.pop %v290
      %v308 = vtanh.pop %v294
      %v309 = vtanh.pop %v296
      %v310 = vtanh.pop %v300
      %v311 = vtanh.pop %v302
      %v312 = vmul.f32 %v305, 0.5
      %v313 = vmul.f32 %v307, 0.5
      %v314 = vmul.f32 %v309, 0.5
      %v315 = vmul.f32 %v311, 0.5
      %v316 = vadd.f32 %v312, 0.5
      %v317 = vadd.f32 %v313, 0.5
      %v318 = vadd.f32 %v314, 0.5
      %v319 = vadd.f32 %v315, 0.5
      %v320 = vmul.f32 %v304, %v316
      %v321 = vmul.f32 %v306, %v317
      %v322 = vmul.f32 %v308, %v318
      %v323 = vmul.f32 %v310, %v319
      %324 = vst [vmem:[%s172] sm:$0xff] %v320
      %325 = vst [vmem:[%s172 + $0x8] sm:$0xff] %v321
      %326 = vst [vmem:[%s172 + $0x10] sm:$0xff] %v322
      %327 = vst [vmem:[%s172 + $0x18] sm:$0xff] %v323
      %s328 = smul.u32 4, %s14
      %p329 = scmp.lt.s32.totalorder %s328, 7
      %s330 = scalar_select %p329, %s328, 7
      %s331 = smul.addr %s330, 8
      %s332 = scalar_lea.vmem %s3, %s331
      // Predicated region
      $region33: #{gated_tanh_fused.1} parent=31 // pred_check
        %p333 = pneg %p100
      $region34: #{gated_tanh_fused.1} parent=31 // pred_check_branch
        %335 = sbr.rel (%p333) target = $region36
      $region35: #{gated_tanh_fused.1} parent=31 // pred_region
        %s336 = smul.u32 4, %s14
      $region36: #{gated_tanh_fused.1} parent=31 // pred_fallthru
        _
    $region32: #{gated_tanh_fused.1} parent=5 // pred_fallthru
      _
    %p337 = scmp.le.s32.totalorder 2, %s9
    // Predicated region
    $region37: #{gated_tanh_fused.1} parent=5 // pred_check
      %p338 = pneg %p337
    $region38: #{gated_tanh_fused.1} parent=5 // pred_check_branch
      %340 = sbr.rel (%p338) target = $region40
    $region39: #{gated_tanh_fused.1} parent=5 // pred_region
      %s341 = ssub.s32 %s9, 2
      // Predicated region
      $region41: #{gated_tanh_fused.1} parent=39 // pred_check
        %p342 = pneg %p106
      $region42: #{gated_tanh_fused.1} parent=39 // pred_check_branch
        %344 = sbr.rel (%p342) target = $region44
      $region43: #{gated_tanh_fused.1} parent=39 // pred_region
        %s345 = smul.u32 4, %s15
        %p346 = scmp.lt.s32.totalorder %s345, 7
        %s347 = scalar_select %p346, %s345, 7
        %s348 = smul.addr %s347, 8
        %s349 = scalar_lea.vmem %s3, %s348
      $region44: #{gated_tanh_fused.1} parent=39 // pred_fallthru
        _
    $region40: #{gated_tanh_fused.1} parent=5 // pred_fallthru
      _
  $region6: #{gated_tanh_fused.1} parent=0 // loop_footer
    %s13 = sadd.s32 1, %s9
  $region7: #{gated_tanh_fused.1} parent=0 // loop_footer_branch
    %8 = sbr.rel target = $region3
  $region8: #{gated_tanh_fused.1} parent=0 // loop_exit
    _

</llo_original>
